<compile_context>
chip_gen: v7x
topology: tpu7x:2x2x1
jax: 0.10.0
libtpu: 0.0.40
codegen_flags: <defaults>
</compile_context>

<pallas_src>
import functools

import jax
import jax.numpy as jnp
from jax.experimental import pallas as pl
from jax.experimental.pallas import tpu as pltpu


def _round_up(x, m):
    return ((x + m - 1) // m) * m


# ---------------------------------------------------------------------------
# Kernel 1: global average pool (PoolFeatures hot path)
# ---------------------------------------------------------------------------
def _gap_single_kernel(x_ref, out_ref, *, inv_hw):
    # x_ref:   (tile_rows, hw)      full reduction extent in one block
    # out_ref: (1, 1, tile_rows)    lane-dense pooled means for this row block
    x = x_ref[...].astype(jnp.float32)
    sums = jnp.sum(x, axis=-1)                       # one cross-lane reduce per row tile
    out_ref[...] = (sums * inv_hw).reshape(out_ref.shape).astype(out_ref.dtype)


def _gap_multi_kernel(x_ref, out_ref, acc_ref, *, hw, tile_k, k_tiles,
                      needs_mask, inv_hw):
    # x_ref:   (tile_rows, tile_k)  current block of the (N*C, H*W) view
    # out_ref: (1, 1, tile_rows)    lane-dense pooled means for this row block
    # acc_ref: (tile_rows, 128)     f32 per-lane partial sums (persist across k steps)
    k = pl.program_id(1)
    last = k_tiles - 1

    @pl.when(k == 0)
    def _():
        acc_ref[...] = jnp.zeros_like(acc_ref)

    def accumulate(valid_cols):
        # Sum `valid_cols` columns of this tile into the 128 accumulator lanes.
        # Lane-aligned slab adds stay on the VPU (no per-step XLU reduce); only
        # the boundary slab of the final tile pays an iota/compare/select mask.
        n_full = valid_cols // 128
        tail = valid_cols - n_full * 128
        psum = None
        for i in range(n_full):
            slab = x_ref[:, i * 128:(i + 1) * 128].astype(jnp.float32)
            psum = slab if psum is None else psum + slab
        if tail:
            slab = x_ref[:, n_full * 128:(n_full + 1) * 128].astype(jnp.float32)
            lane = jax.lax.broadcasted_iota(jnp.int32, slab.shape, 1)
            slab = jnp.where(lane < tail, slab, 0.0)
            psum = slab if psum is None else psum + slab
        acc_ref[...] += psum

    if needs_mask:
        rem = hw - last * tile_k          # static: valid columns in the final tile

        @pl.when(k != last)
        def _():
            accumulate(tile_k)            # interior tiles: no masking work at all

        @pl.when(k == last)
        def _():
            accumulate(rem)
    else:
        accumulate(tile_k)

    @pl.when(k == last)
    def _():
        sums = jnp.sum(acc_ref[...], axis=-1)        # the single cross-lane reduce
        out_ref[...] = (sums * inv_hw).reshape(out_ref.shape).astype(out_ref.dtype)


def _choose_tiles(rows, hw, dtype_bytes,
                  target_block_bytes=4 * 1024 * 1024,
                  max_single_tile_k=4096,
                  tile_k_when_split=2048):
    """Pick (tile_rows, tile_k) for the (rows, hw) -> (rows,) mean reduction."""
    # Reduction (lane) axis: single tile when H*W is modest, else 2048-wide
    # (multiple of 128) tiles so per-block VMEM is bounded independent of shape.
    if hw <= max_single_tile_k:
        tile_k = hw                       # full lane extent -> always a legal block
    else:
        tile_k = tile_k_when_split

    # Row (sublane) axis: budget against the lane-PADDED footprint (e.g. 7x7=49
    # pools pad to 128 lanes in VMEM).  bf16 packs two rows per sublane, so use
    # 16-row granules for sub-32-bit dtypes to avoid packed-row relayouts.
    row_align = 8 if dtype_bytes >= 4 else 16
    padded_k = max(_round_up(tile_k, 128), 128)
    budget_rows = max(row_align, target_block_bytes // (padded_k * dtype_bytes))
    budget_rows = (budget_rows // row_align) * row_align

    # Keep at least 2 row tiles when rows permit so dimension_semantics=("parallel",...)
    # can shard the row axis across v7x's two TensorCores (no-op on 1-TC v5e/v6e).
    if rows >= 2 * row_align:
        half_rows = _round_up(-(-rows // 2), row_align)
        budget_rows = min(budget_rows, half_rows)

    if rows <= budget_rows:
        tile_rows = rows                  # full extent -> always a legal block
    else:
        tile_rows = budget_rows           # multiple of row_align
    return tile_rows, tile_k


def pool_features(x, *, target_block_bytes=4 * 1024 * 1024):
    """Replicates PoolFeatures.forward.

    Args:
      x: (N, C, H, W) array (NCHW, like PyTorch).

    Returns:
      (out, feature_maps): out is x unchanged; feature_maps = avg_pool2d(x, (H, W))
      with shape (N, C, 1, 1).
    """
    N, C, H, W = x.shape
    rows, hw = N * C, H * W
    xf = x.reshape(rows, hw)
    dtype_bytes = jnp.dtype(x.dtype).itemsize

    tile_rows, tile_k = _choose_tiles(rows, hw, dtype_bytes, target_block_bytes)
    r_tiles = pl.cdiv(rows, tile_rows)
    k_tiles = pl.cdiv(hw, tile_k)
    inv_hw = 1.0 / hw

    # Explicit VMEM budget: double-buffered input blocks + (tiny) lane-dense output
    # blocks + the f32 accumulator on the multi-step path, plus headroom.
    in_block = _round_up(tile_rows, 8) * max(_round_up(tile_k, 128), 128) * dtype_bytes
    out_block = 8 * max(_round_up(tile_rows, 128), 128) * dtype_bytes
    acc_bytes = _round_up(tile_rows, 8) * 128 * 4 if k_tiles > 1 else 0
    vmem_limit = int(min(48 << 20,
                         max(2 * in_block + 2 * out_block + acc_bytes + (4 << 20),
                             16 << 20)))

    # Bandwidth-bound op: tell XLA's scheduler so it can overlap with neighbors.
    cost = pl.CostEstimate(
        flops=rows * hw,
        transcendentals=0,
        bytes_accessed=rows * hw * dtype_bytes + rows * dtype_bytes,
    )

    # Lane-dense output: one (1, 1, tile_rows) row per row tile (dense vst, ~no
    # VMEM padding); un-padded back to (rows,) below.
    out_shape = jax.ShapeDtypeStruct((r_tiles, 1, tile_rows), x.dtype)

    if k_tiles == 1:
        pooled = pl.pallas_call(
            functools.partial(_gap_single_kernel, inv_hw=inv_hw),
            out_shape=out_shape,
            grid_spec=pltpu.PrefetchScalarGridSpec(
                num_scalar_prefetch=0,
                grid=(r_tiles,),
                in_specs=[pl.BlockSpec((tile_rows, tile_k), lambda r: (r, 0))],
                out_specs=pl.BlockSpec((1, 1, tile_rows), lambda r: (r, 0, 0)),
            ),
            compiler_params=pltpu.CompilerParams(
                dimension_semantics=("parallel",),
                vmem_limit_bytes=vmem_limit),
            cost_estimate=cost,
        )(xf)
    else:
        needs_mask = (hw % tile_k) != 0
        pooled = pl.pallas_call(
            functools.partial(_gap_multi_kernel, hw=hw, tile_k=tile_k,
                              k_tiles=k_tiles, needs_mask=needs_mask, inv_hw=inv_hw),
            out_shape=out_shape,
            grid_spec=pltpu.PrefetchScalarGridSpec(
                num_scalar_prefetch=0,
                grid=(r_tiles, k_tiles),                      # reduction axis last
                in_specs=[pl.BlockSpec((tile_rows, tile_k), lambda r, k: (r, k))],
                out_specs=pl.BlockSpec((1, 1, tile_rows), lambda r, k: (r, 0, 0)),
                scratch_shapes=[pltpu.VMEM((tile_rows, 128), jnp.float32)],
            ),
            compiler_params=pltpu.CompilerParams(
                dimension_semantics=("parallel", "arbitrary"),
                vmem_limit_bytes=vmem_limit),
            cost_estimate=cost,
        )(xf)

    pooled = pooled.reshape(r_tiles * tile_rows)[:rows].reshape(N, C, 1, 1)
    # Module returns the input unmodified; feature_maps is the stored state.
    return x, pooled


# ---------------------------------------------------------------------------
# Kernel 2: attribute head (linear + tanh on [:, :9], sigmoid on [:, 9:])
# ---------------------------------------------------------------------------
def _attr_head_kernel(feat_ref, w_ref, b_ref, out_ref, *, n_tanh):
    scores = jnp.dot(feat_ref[...].astype(jnp.float32),
                     w_ref[...].astype(jnp.float32),
                     preferred_element_type=jnp.float32)
    scores = scores + b_ref[...].astype(jnp.float32)
    col = jax.lax.broadcasted_iota(jnp.int32, scores.shape, 1)
    out = jnp.where(col < n_tanh, jnp.tanh(scores), jax.nn.sigmoid(scores))
    out_ref[...] = out.astype(out_ref.dtype)


def attribute_head(features, w, b, *, n_tanh=9, use_pallas=None):
    """scores = features @ w + b; cat([tanh(scores[:, :n_tanh]), sigmoid(scores[:, n_tanh:])])."""
    B, F = features.shape
    Fw, n_out = w.shape
    assert F == Fw
    if use_pallas is None:
        # Per perf feedback: a (2, 15104) @ (15104, 12) head is launch-overhead
        # bound (us of fixed cost vs ns of MXU work) -> let XLA fuse it unless
        # the batch is large enough to fill a kernel.
        use_pallas = B >= 128
    if not use_pallas:
        scores = (features.astype(jnp.float32) @ w.astype(jnp.float32)
                  + b.astype(jnp.float32))
        out = jnp.concatenate([jnp.tanh(scores[:, :n_tanh]),
                               jax.nn.sigmoid(scores[:, n_tanh:])], axis=1)
        return out.astype(features.dtype)
    return pl.pallas_call(
        functools.partial(_attr_head_kernel, n_tanh=n_tanh),
        out_shape=jax.ShapeDtypeStruct((B, n_out), features.dtype),
    )(features, w, b.reshape(1, n_out))


def resnet_gap_features_forward(stage_activations, attr_w, attr_b):
    """Mirrors ResNetGAPFeatures.forward, minus the external ResNet backbone.

    Each stage activation plays the role of one block output that PoolFeatures hooks.
    """
    pooled = []
    for act in stage_activations:
        _, fm = pool_features(act)            # PoolFeatures: identity + stored GAP
        pooled.append(fm)
    N = stage_activations[0].shape[0]
    features = jnp.concatenate([p.reshape(N, -1) for p in pooled], axis=1)
    # TODO(synk): F.dropout(p=0.2) before the linear is omitted (eval-mode identity);
    # training parity would need pltpu.prng_seed / prng_random_bits masking.
    predictions = attribute_head(features, attr_w, attr_b, n_tanh=9)
    return predictions, pooled


if __name__ == "__main__":
    key = jax.random.PRNGKey(0)
    k0, k1, k2, k3, kw, kb = jax.random.split(key, 6)

    # Synthetic per-stage activations standing in for resnet block outputs.
    #  - (2, 4, 16, 16): small, single k-tile, single row tile
    #  - (2, 8, 7, 7)  : the classic 7x7 GAP path, two row tiles (megacore split)
    #  - (2, 16, 72, 72): H*W > 4096 -> reduction-axis tiling + gated masked k-tail
    #  - (2, 10, 12, 12): rows not divisible by tile_rows -> padded row tile + slice
    stage_shapes = [(2, 4, 16, 16), (2, 8, 7, 7), (2, 16, 72, 72), (2, 10, 12, 12)]
    stages = [jax.random.normal(k, s, dtype=jnp.float32)
              for k, s in zip((k0, k1, k2, k3), stage_shapes)]

    total_c = sum(s[1] for s in stage_shapes)       # 38
    n_features = 12
    attr_w = jax.random.normal(kw, (total_c, n_features), dtype=jnp.float32) * 0.1
    attr_b = jax.random.normal(kb, (n_features,), dtype=jnp.float32) * 0.1

    # --- per-stage PoolFeatures checks (identity output + GAP) ---
    for x in stages:
        out, fm = pool_features(x)
        out = jax.block_until_ready(out)
        fm = jax.block_until_ready(fm)
        ref = jnp.mean(x, axis=(2, 3), keepdims=True)
        assert out.shape == x.shape
        assert fm.shape == (x.shape[0], x.shape[1], 1, 1)
        assert jnp.allclose(out, x)
        assert jnp.allclose(fm, ref, atol=1e-5, rtol=1e-5)

    # --- full head check (concat pooled -> linear -> tanh/sigmoid split) ---
    preds, pooled = resnet_gap_features_forward(stages, attr_w, attr_b)
    preds = jax.block_until_ready(preds)

    feats_ref = jnp.concatenate(
        [jnp.mean(x, axis=(2, 3)) for x in stages], axis=1)
    scores_ref = feats_ref @ attr_w + attr_b
    preds_ref = jnp.concatenate(
        [jnp.tanh(scores_ref[:, :9]), jax.nn.sigmoid(scores_ref[:, 9:])], axis=1)

    assert preds.shape == (2, n_features)
    assert jnp.allclose(preds, preds_ref, atol=1e-5, rtol=1e-5)

    # --- explicit Pallas attribute-head kernel check (forced path) ---
    preds_pallas = attribute_head(feats_ref, attr_w, attr_b, n_tanh=9, use_pallas=True)
    preds_pallas = jax.block_until_ready(preds_pallas)
    assert jnp.allclose(preds_pallas, preds_ref, atol=1e-5, rtol=1e-5)

    print("KERNEL_OK")
</pallas_src>

<mosaic_0001>
module attributes {stable_mosaic.version = 11 : i64} {
  func.func @_gap_single_kernel(%arg0: i32, %arg1: memref<8x256xf32, #tpu.memory_space<vmem>>, %arg2: memref<1x1x8xf32, #tpu.memory_space<vmem>>) attributes {dimension_semantics = [#tpu.dimension_semantics<parallel>], iteration_bounds = array<i64: 1>, scalar_prefetch = 0 : i64, scratch_operands = 0 : i64, tpu.core_type = #tpu.core_type<tc>, window_params = [{transform_indices = @transform_0, window_bounds = array<i64: 8, 256>}, {transform_indices = @transform_1, window_bounds = array<i64: 1, 1, 8>}]} {
    %c0 = arith.constant 0 : index
    %c0_0 = arith.constant 0 : index
    %0 = vector.load %arg1[%c0, %c0_0] : memref<8x256xf32, #tpu.memory_space<vmem>>, vector<8x256xf32>
    %cst = arith.constant dense<0.000000e+00> : vector<8xf32>
    %1 = vector.multi_reduction <add>, %0, %cst [1] : vector<8x256xf32> to vector<8xf32>
    %cst_1 = arith.constant 3.906250e-03 : f32
    %2 = vector.broadcast %cst_1 : f32 to vector<8xf32>
    %3 = arith.mulf %1, %2 : vector<8xf32>
    %4 = vector.shape_cast %3 : vector<8xf32> to vector<1x1x8xf32>
    %c0_2 = arith.constant 0 : index
    %c0_3 = arith.constant 0 : index
    %c0_4 = arith.constant 0 : index
    %5 = vector.load %arg2[%c0_2, %c0_3, %c0_4] : memref<1x1x8xf32, #tpu.memory_space<vmem>>, vector<1x1x8xf32>
    tpu.vector_store %arg2[%c0_2, %c0_3, %c0_4], %4 {strides = array<i32>} : memref<1x1x8xf32, #tpu.memory_space<vmem>>, vector<1x1x8xf32>,
    return
  }
  func.func @transform_0(%arg0: i32) -> (i32, i32) {
    %c0_i32 = arith.constant 0 : i32
    %c0_i32_0 = arith.constant 0 : i32
    return %arg0, %c0_i32 : i32, i32
  }
  func.func @transform_1(%arg0: i32) -> (i32, i32, i32) {
    %c0_i32 = arith.constant 0 : i32
    %c0_i32_0 = arith.constant 0 : i32
    %c0_i32_1 = arith.constant 0 : i32
    return %arg0, %c0_i32, %c0_i32_0 : i32, i32, i32
  }
}

</mosaic_0001>

<llo_original>
// kernel: tpu_custom_call.1
$region0: #{tpu_custom_call.1}
  #allocation0 [shape = 'u32[]', space=smem, size = 0x4, offset = 0x4, fixed_abs, tag = 'smem constant byte address 0x4 - core index']
  #allocation1 [shape = 'u32[144,128]{1,0:T(1,128)}', space=vmem, size = 0x12000, scoped, tag = 'internal scratch']
  %s0 = inlined_call_operand.hbm [shape: f32[8,256], index: 0, kind: input, shape index: {}]
  %s1 = inlined_call_operand.hbm [shape: f32[1,1,8], index: 1, kind: output, shape index: {}]
  %s2 = sld [smem:[#allocation0]]
  $region18: #{tpu_custom_call.1} parent=0
    _
  %s4 = ssub.s32 1, %s2
  %s5 = scalar_select 0, %s4, %s2
  $region1: #{tpu_custom_call.1} parent=0
    #allocation2 [shape = 'u8[8192]{0}', space=vmem, size = 0x2000, scoped, tag = 'input window, operand 0, single buffered']
    #allocation3 [shape = 's32[1]{0}', space=sflag, size = 0x4, scoped, tag = 'scoped memory for tpu_custom_call.1']
    #allocation4 [shape = 's32[1]{0}', space=sflag, size = 0x4, scoped, tag = 'scoped memory for tpu_custom_call.1']
    #allocation5 [shape = 'u8[512]{0}', space=vmem, size = 0x400, scoped, tag = 'output window, operand 0, single buffered']
    %6 = vsyncpa [#allocation3], 0
    %7 = vsyncpa [#allocation4], 0
    // Predicated region
    $region2: #{tpu_custom_call.1} parent=1 // pred_check
      _
    $region3: #{tpu_custom_call.1} parent=1 // pred_check_branch
      %9 = sbr.rel (0) target = $region5
    $region4: #{tpu_custom_call.1} parent=1 // pred_region
      %s11 = ssub.s32 256, 256
      %12 = vsyncadd [#allocation3], %s11
      %s14 = sshll.u32 [#allocation2], 4
      %s15 = int_to_ptr.vmem [resolvable:$true] %s14
      %17 = dma.hbm_to_vmem [thread:$0]  %s0, 256, %s15, [#allocation3]
    $region5: #{tpu_custom_call.1} parent=1 // pred_fallthru
      _
    // Predicated region
    $region6: #{tpu_custom_call.1} parent=1 // pred_check
      _
    $region7: #{tpu_custom_call.1} parent=1 // pred_check_branch
      %19 = sbr.rel (0) target = $region9
    $region8: #{tpu_custom_call.1} parent=1 // pred_region
      %20 = dma.done [#allocation3], 256
    $region9: #{tpu_custom_call.1} parent=1 // pred_fallthru
      _
    %v21 = vld [vmem:[#allocation2] sm:$0xff]
    %v22 = vld [vmem:[#allocation2 + $0x8] sm:$0xff]
    %v23 = vadd.f32 %v21, %v22
    %24 = vadd.xlane.f32.xlu0 %v23
    %v25 = vpop.xlane.xlu0 %24
    %v26 = vmul.f32 %v25, 0.00390625
    %v28 = vlaneseq
    %v29 = vand.u32 %v28, 127
    %v30 = vlaneseq
    %v31 = vshrl.u32 %v30, 7
    %v32 = vsub.s32 %v29, %v31
    %v33 = vrot.slane %v26, %v32
    %vm35 = vcmask 57344
    %36 = vst.msk [vmem:[#allocation5] sm:$0x1] %vm35, %v33
    // Predicated region
    $region10: #{tpu_custom_call.1} parent=1 // pred_check
      _
    $region11: #{tpu_custom_call.1} parent=1 // pred_check_branch
      %38 = sbr.rel (0) target = $region13
    $region12: #{tpu_custom_call.1} parent=1 // pred_region
      %s40 = ssub.s32 16, 16
      %41 = vsyncadd [#allocation4], %s40
      %s43 = sshll.u32 [#allocation5], 4
      %s44 = int_to_ptr.vmem [resolvable:$true] %s43
      %46 = dma.vmem_to_hbm [thread:$0]  %s44, 16, %s1, [#allocation4]
    $region13: #{tpu_custom_call.1} parent=1 // pred_fallthru
      _
    // Predicated region
    $region14: #{tpu_custom_call.1} parent=1 // pred_check
      _
    $region15: #{tpu_custom_call.1} parent=1 // pred_check_branch
      %48 = sbr.rel (0) target = $region17
    $region16: #{tpu_custom_call.1} parent=1 // pred_region
      %49 = dma.done [#allocation4], 16
    $region17: #{tpu_custom_call.1} parent=1 // pred_fallthru
      _
    %50 = vsyncpa [#allocation3], 1
    %51 = vsyncpa [#allocation4], 1

</llo_original>
